<compile_context>
chip_gen: v7x
topology: tpu7x:2x2x1
jax: 0.10.0
libtpu: 0.0.40
codegen_flags: <defaults>
</compile_context>

<pallas_src>
import functools
import math

import jax
import jax.numpy as jnp
from jax import lax
from jax.experimental import pallas as pl
from jax.experimental.pallas import tpu as pltpu

LANE = 128
SUBLANE = 8
# Streaming tile rows: 2048 -> 1 MiB f32 per input per step (double-buffered
# inputs: 4 MiB).  Sweep 2048-4096 on v6e/v7x; keep 1024-2048 on v5e.
DEFAULT_TM = 2048
# Fixed accumulator rows, decoupled from TM (2 x 256x128x4 = 256 KiB scratch).
ACC_ROWS = 256
# Per-input block budget for the fused small-input path (2 MiB -> 8 MiB with
# both inputs double-buffered, well inside the 32 MiB scoped VMEM limit).
FUSE_BLOCK_BYTES = 2 * 1024 * 1024
VMEM_LIMIT = 32 * 1024 * 1024  # safe on v5e/v6e (128 MiB) and v7x (64 MiB)


def _round_up(x, m):
    return ((x + m - 1) // m) * m


def _dice_fused_kernel(p_ref, t_ref, o_ref):
    """Whole per-batch reduction in one block; Bt batches folded per step."""
    # .long() in PyTorch truncates toward zero; astype(int32) matches for the
    # value ranges of interest.  Back to f32 for cheap accumulation.
    p = p_ref[...].astype(jnp.int32).astype(jnp.float32)   # (Bt, M, LANE)
    t = t_ref[...].astype(jnp.int32).astype(jnp.float32)
    inter = jnp.sum(jnp.sum(p * t, axis=-1), axis=-1, keepdims=True)  # (Bt, 1)
    union = jnp.sum(jnp.sum(p + t, axis=-1), axis=-1, keepdims=True)  # (Bt, 1)
    # Matches torch: 1 - 2*inter/union (no smooth; union==0 -> inf/nan).
    term = 1.0 - 2.0 * inter / union                                  # (Bt, 1)
    o_ref[...] = jnp.broadcast_to(term[:, :, None], o_ref.shape).astype(o_ref.dtype)


def _dice_stream_kernel(p_ref, t_ref, o_ref, inter_acc, union_acc, *,
                        m_rows, tm, acc_rows):
    k = pl.program_id(1)
    nk = pl.num_programs(1)

    @pl.when(k == 0)
    def _init():
        inter_acc[...] = jnp.zeros_like(inter_acc)
        union_acc[...] = jnp.zeros_like(union_acc)

    ragged = (m_rows % tm) != 0           # static
    n_chunks = tm // acc_rows             # static

    # Consume the (tm, LANE) tile in acc_rows chunks via static ref slices
    # (zero-cost views) so the accumulator scratch stays small.  Hot loop is
    # pure VPU adds; no per-step scalar reductions.
    inter_p = jnp.zeros((acc_rows, LANE), jnp.float32)
    union_p = jnp.zeros((acc_rows, LANE), jnp.float32)
    for c in range(n_chunks):
        lo = c * acc_rows
        p = p_ref[0, lo:lo + acc_rows, :].astype(jnp.int32).astype(jnp.float32)
        t = t_ref[0, lo:lo + acc_rows, :].astype(jnp.int32).astype(jnp.float32)
        if ragged:  # static: only emitted when the last k tile is partial
            row = lax.broadcasted_iota(jnp.int32, (acc_rows, LANE), 0)
            valid = (k * tm + lo + row) < m_rows
            p = jnp.where(valid, p, 0.0)
            t = jnp.where(valid, t, 0.0)
        inter_p = inter_p + p * t
        union_p = union_p + p + t
    inter_acc[...] += inter_p
    union_acc[...] += union_p

    @pl.when(k == nk - 1)
    def _finalize():
        inter = jnp.sum(inter_acc[...])
        union = jnp.sum(union_acc[...])
        # Matches torch: 1 - 2*inter/union (no smooth; union==0 -> inf/nan).
        term = 1.0 - 2.0 * inter / union
        o_ref[...] = jnp.broadcast_to(term, o_ref.shape).astype(o_ref.dtype)


def dice_loss(predict, target, *, tm=DEFAULT_TM,
              fuse_block_bytes=FUSE_BLOCK_BYTES):
    assert predict.shape == target.shape
    B = predict.shape[0]

    pf = predict.reshape(B, -1)
    tf = target.reshape(B, -1)
    n = pf.shape[1]

    # Callers should pass lane-multiple C*H*W (true for typical segmentation
    # shapes).  Otherwise we fall back to a wrapper pad, which costs a full
    # HBM copy of both tensors; zeros are neutral for both sums.
    # TODO(synk): handle the <128-element lane tail in-kernel to avoid the pad.
    pad = (-n) % LANE
    if pad:
        pf = jnp.pad(pf, ((0, 0), (0, pad)))
        tf = jnp.pad(tf, ((0, 0), (0, pad)))

    M = pf.shape[1] // LANE
    pf = pf.reshape(B, M, LANE)
    tf = tf.reshape(B, M, LANE)

    itemsize = jnp.dtype(pf.dtype).itemsize
    per_batch_bytes = M * LANE * itemsize

    if per_batch_bytes <= fuse_block_bytes:
        # ---------------- fused small-input path ----------------
        bt = 1
        for d in range(1, B + 1):
            if B % d == 0 and d * per_batch_bytes <= fuse_block_bytes:
                bt = d
        out = pl.pallas_call(
            _dice_fused_kernel,
            out_shape=jax.ShapeDtypeStruct((B, 1, LANE), jnp.float32),
            grid_spec=pltpu.PrefetchScalarGridSpec(
                num_scalar_prefetch=0,
                grid=(B // bt,),
                in_specs=[
                    pl.BlockSpec((bt, M, LANE), lambda i: (i, 0, 0)),
                    pl.BlockSpec((bt, M, LANE), lambda i: (i, 0, 0)),
                ],
                out_specs=pl.BlockSpec((bt, 1, LANE), lambda i: (i, 0, 0)),
            ),
            compiler_params=pltpu.CompilerParams(
                dimension_semantics=("parallel",),
                vmem_limit_bytes=VMEM_LIMIT,
            ),
        )(pf, tf)
    else:
        # ---------------- streaming large-input path ----------------
        assert tm % SUBLANE == 0
        tm_eff = min(tm, _round_up(M, SUBLANE))
        tm_eff = max(SUBLANE, (tm_eff // SUBLANE) * SUBLANE)
        acc_rows = math.gcd(tm_eff, ACC_ROWS)
        K = pl.cdiv(M, tm_eff)

        kernel = functools.partial(
            _dice_stream_kernel, m_rows=M, tm=tm_eff, acc_rows=acc_rows)

        out = pl.pallas_call(
            kernel,
            out_shape=jax.ShapeDtypeStruct((B, 1, LANE), jnp.float32),
            grid_spec=pltpu.PrefetchScalarGridSpec(
                num_scalar_prefetch=0,
                grid=(B, K),
                in_specs=[
                    pl.BlockSpec((1, tm_eff, LANE), lambda b, k: (b, k, 0)),
                    pl.BlockSpec((1, tm_eff, LANE), lambda b, k: (b, k, 0)),
                ],
                out_specs=pl.BlockSpec((1, 1, LANE), lambda b, k: (b, 0, 0)),
                scratch_shapes=[
                    pltpu.VMEM((acc_rows, LANE), jnp.float32),  # sum(p*t)
                    pltpu.VMEM((acc_rows, LANE), jnp.float32),  # sum(p)+sum(t)
                ],
            ),
            compiler_params=pltpu.CompilerParams(
                dimension_semantics=("parallel", "arbitrary"),
                vmem_limit_bytes=VMEM_LIMIT,
            ),
        )(pf, tf)

    # Per-batch losses live in lane 0; mean over B floats is trivial in XLA.
    return jnp.mean(out[:, 0, 0])


def _dice_ref(predict, target):
    B = predict.shape[0]
    p = predict.reshape(B, -1).astype(jnp.int32)
    t = target.reshape(B, -1).astype(jnp.int32)
    inter = jnp.sum(p * t, axis=1)
    union = jnp.sum(p, axis=1) + jnp.sum(t, axis=1)
    return jnp.mean(
        1.0 - 2.0 * inter.astype(jnp.float32) / union.astype(jnp.float32)
    )


if __name__ == "__main__":
    key = jax.random.PRNGKey(0)
    k1, k2, k3, k4 = jax.random.split(key, 4)

    # Primary small case with the module's segmentation-style (B, C, H, W).
    # M = 8 -> fused path, both batches folded into a single grid step.
    B, C, H, W = 2, 4, 16, 16
    predict = (jax.random.uniform(k1, (B, C, H, W)) * 3.0).astype(jnp.float32)
    target = jax.random.randint(k2, (B, C, H, W), 0, 2).astype(jnp.float32)

    out = jax.block_until_ready(dice_loss(predict, target))
    ref = _dice_ref(predict, target)
    assert jnp.allclose(out, ref, rtol=1e-6, atol=1e-6), (out, ref)

    # Secondary case forcing the streaming path (fuse_block_bytes=0) with a
    # small tile so the tiled reduction, small-accumulator chunking and the
    # ragged last-tile mask all get exercised (M=72, tm=32 -> K=3, last tile
    # has 8 valid rows).
    B2, C2, H2, W2 = 2, 4, 48, 48
    predict2 = (jax.random.uniform(k3, (B2, C2, H2, W2)) * 3.0).astype(jnp.float32)
    target2 = jax.random.randint(k4, (B2, C2, H2, W2), 0, 2).astype(jnp.float32)

    out2 = jax.block_until_ready(
        dice_loss(predict2, target2, tm=32, fuse_block_bytes=0))
    ref2 = _dice_ref(predict2, target2)
    assert jnp.allclose(out2, ref2, rtol=1e-6, atol=1e-6), (out2, ref2)

    print("KERNEL_OK")
</pallas_src>

<mosaic_0001>
module attributes {stable_mosaic.version = 11 : i64} {
  func.func @_dice_fused_kernel(%arg0: i32, %arg1: memref<2x8x128xf32, #tpu.memory_space<vmem>>, %arg2: memref<2x8x128xf32, #tpu.memory_space<vmem>>, %arg3: memref<2x1x128xf32, #tpu.memory_space<vmem>>) attributes {dimension_semantics = [#tpu.dimension_semantics<parallel>], iteration_bounds = array<i64: 1>, scalar_prefetch = 0 : i64, scratch_operands = 0 : i64, tpu.core_type = #tpu.core_type<tc>, window_params = [{transform_indices = @transform_0, window_bounds = array<i64: 2, 8, 128>}, {transform_indices = @transform_1, window_bounds = array<i64: 2, 8, 128>}, {transform_indices = @transform_2, window_bounds = array<i64: 2, 1, 128>}]} {
    %c0 = arith.constant 0 : index
    %c0_0 = arith.constant 0 : index
    %c0_1 = arith.constant 0 : index
    %0 = vector.load %arg1[%c0, %c0_0, %c0_1] : memref<2x8x128xf32, #tpu.memory_space<vmem>>, vector<2x8x128xf32>
    %1 = arith.fptosi %0 : vector<2x8x128xf32> to vector<2x8x128xi32>
    %2 = arith.sitofp %1 : vector<2x8x128xi32> to vector<2x8x128xf32>
    %c0_2 = arith.constant 0 : index
    %c0_3 = arith.constant 0 : index
    %c0_4 = arith.constant 0 : index
    %3 = vector.load %arg2[%c0_2, %c0_3, %c0_4] : memref<2x8x128xf32, #tpu.memory_space<vmem>>, vector<2x8x128xf32>
    %4 = arith.fptosi %3 : vector<2x8x128xf32> to vector<2x8x128xi32>
    %5 = arith.sitofp %4 : vector<2x8x128xi32> to vector<2x8x128xf32>
    %6 = arith.mulf %2, %5 : vector<2x8x128xf32>
    %cst = arith.constant dense<0.000000e+00> : vector<2x8xf32>
    %7 = vector.multi_reduction <add>, %6, %cst [2] : vector<2x8x128xf32> to vector<2x8xf32>
    %cst_5 = arith.constant dense<0.000000e+00> : vector<2xf32>
    %8 = vector.multi_reduction <add>, %7, %cst_5 [1] : vector<2x8xf32> to vector<2xf32>
    %9 = vector.shape_cast %8 : vector<2xf32> to vector<2x1xf32>
    %10 = arith.addf %2, %5 : vector<2x8x128xf32>
    %cst_6 = arith.constant dense<0.000000e+00> : vector<2x8xf32>
    %11 = vector.multi_reduction <add>, %10, %cst_6 [2] : vector<2x8x128xf32> to vector<2x8xf32>
    %cst_7 = arith.constant dense<0.000000e+00> : vector<2xf32>
    %12 = vector.multi_reduction <add>, %11, %cst_7 [1] : vector<2x8xf32> to vector<2xf32>
    %13 = vector.shape_cast %12 : vector<2xf32> to vector<2x1xf32>
    %cst_8 = arith.constant 2.000000e+00 : f32
    %14 = vector.broadcast %cst_8 : f32 to vector<2x1xf32>
    %15 = arith.mulf %14, %9 : vector<2x1xf32>
    %16 = arith.divf %15, %13 : vector<2x1xf32>
    %cst_9 = arith.constant 1.000000e+00 : f32
    %17 = vector.broadcast %cst_9 : f32 to vector<2x1xf32>
    %18 = arith.subf %17, %16 : vector<2x1xf32>
    %19 = vector.shape_cast %18 : vector<2x1xf32> to vector<2x1x1xf32>
    %20 = vector.shape_cast %19 : vector<2x1x1xf32> to vector<2x1x1xf32>
    %21 = vector.broadcast %20 : vector<2x1x1xf32> to vector<2x1x128xf32>
    %c0_10 = arith.constant 0 : index
    %c0_11 = arith.constant 0 : index
    %c0_12 = arith.constant 0 : index
    %22 = vector.load %arg3[%c0_10, %c0_11, %c0_12] : memref<2x1x128xf32, #tpu.memory_space<vmem>>, vector<2x1x128xf32>
    tpu.vector_store %arg3[%c0_10, %c0_11, %c0_12], %21 {strides = array<i32>} : memref<2x1x128xf32, #tpu.memory_space<vmem>>, vector<2x1x128xf32>,
    return
  }
  func.func @transform_0(%arg0: i32) -> (i32, i32, i32) {
    %c0_i32 = arith.constant 0 : i32
    %c0_i32_0 = arith.constant 0 : i32
    %c0_i32_1 = arith.constant 0 : i32
    return %arg0, %c0_i32, %c0_i32_0 : i32, i32, i32
  }
  func.func @transform_1(%arg0: i32) -> (i32, i32, i32) {
    %c0_i32 = arith.constant 0 : i32
    %c0_i32_0 = arith.constant 0 : i32
    %c0_i32_1 = arith.constant 0 : i32
    return %arg0, %c0_i32, %c0_i32_0 : i32, i32, i32
  }
  func.func @transform_2(%arg0: i32) -> (i32, i32, i32) {
    %c0_i32 = arith.constant 0 : i32
    %c0_i32_0 = arith.constant 0 : i32
    %c0_i32_1 = arith.constant 0 : i32
    return %arg0, %c0_i32, %c0_i32_0 : i32, i32, i32
  }
}

</mosaic_0001>

<llo_original>
// kernel: tpu_custom_call.1
$region0: #{tpu_custom_call.1}
  #allocation0 [shape = 'u32[]', space=smem, size = 0x4, offset = 0x4, fixed_abs, tag = 'smem constant byte address 0x4 - core index']
  #allocation1 [shape = 'u32[144,128]{1,0:T(1,128)}', space=vmem, size = 0x12000, scoped, tag = 'internal scratch']
  %s0 = inlined_call_operand.hbm [shape: f32[2,8,128], index: 0, kind: input, shape index: {}]
  %s1 = inlined_call_operand.hbm [shape: f32[2,8,128], index: 1, kind: input, shape index: {}]
  %s2 = inlined_call_operand.hbm [shape: f32[2,1,128], index: 2, kind: output, shape index: {}]
  %s3 = sld [smem:[#allocation0]]
  $region26: #{tpu_custom_call.1} parent=0
    _
  %s5 = ssub.s32 1, %s3
  %s6 = scalar_select 0, %s5, %s3
  $region1: #{tpu_custom_call.1} parent=0
    #allocation2 [shape = 'u8[8192]{0}', space=vmem, size = 0x2000, scoped, tag = 'input window, operand 0, single buffered']
    #allocation3 [shape = 's32[1]{0}', space=sflag, size = 0x4, scoped, tag = 'scoped memory for tpu_custom_call.1']
    #allocation4 [shape = 's32[1]{0}', space=sflag, size = 0x4, scoped, tag = 'scoped memory for tpu_custom_call.1']
    #allocation5 [shape = 'u8[8192]{0}', space=vmem, size = 0x2000, scoped, tag = 'input window, operand 1, single buffered']
    #allocation6 [shape = 's32[1]{0}', space=sflag, size = 0x4, scoped, tag = 'scoped memory for tpu_custom_call.1']
    #allocation7 [shape = 'u8[1024]{0}', space=vmem, size = 0x400, scoped, tag = 'output window, operand 0, single buffered']
    %7 = vsyncpa [#allocation3], 0
    %8 = vsyncpa [#allocation6], 0
    %9 = vsyncpa [#allocation4], 0
    // Predicated region
    $region2: #{tpu_custom_call.1} parent=1 // pred_check
      _
    $region3: #{tpu_custom_call.1} parent=1 // pred_check_branch
      %11 = sbr.rel (0) target = $region5
    $region4: #{tpu_custom_call.1} parent=1 // pred_region
      %s13 = ssub.s32 256, 256
      %14 = vsyncadd [#allocation3], %s13
      %s15 = sshll.u32 [#allocation2], 4
      %s16 = int_to_ptr.vmem [resolvable:$true] %s15
      %21 = dma.hbm_to_vmem [thread:$0]  %s0, 256, %s16, [#allocation3], 128, 128, 8
    $region5: #{tpu_custom_call.1} parent=1 // pred_fallthru
      _
    // Predicated region
    $region6: #{tpu_custom_call.1} parent=1 // pred_check
      _
    $region7: #{tpu_custom_call.1} parent=1 // pred_check_branch
      %23 = sbr.rel (0) target = $region9
    $region8: #{tpu_custom_call.1} parent=1 // pred_region
      %s25 = ssub.s32 256, 256
      %26 = vsyncadd [#allocation6], %s25
      %s27 = sshll.u32 [#allocation5], 4
      %s28 = int_to_ptr.vmem [resolvable:$true] %s27
      %33 = dma.hbm_to_vmem [thread:$0]  %s1, 256, %s28, [#allocation6], 128, 128, 8
    $region9: #{tpu_custom_call.1} parent=1 // pred_fallthru
      _
    // Predicated region
    $region10: #{tpu_custom_call.1} parent=1 // pred_check
      _
    $region11: #{tpu_custom_call.1} parent=1 // pred_check_branch
      %35 = sbr.rel (0) target = $region13
    $region12: #{tpu_custom_call.1} parent=1 // pred_region
      %36 = dma.done [#allocation3], 256
    $region13: #{tpu_custom_call.1} parent=1 // pred_fallthru
      _
    // Predicated region
    $region14: #{tpu_custom_call.1} parent=1 // pred_check
      _
    $region15: #{tpu_custom_call.1} parent=1 // pred_check_branch
      %38 = sbr.rel (0) target = $region17
    $region16: #{tpu_custom_call.1} parent=1 // pred_region
      %39 = dma.done [#allocation6], 256
    $region17: #{tpu_custom_call.1} parent=1 // pred_fallthru
      _
    %v40 = vld [vmem:[#allocation2] sm:$0xff]
    %v41 = vld [vmem:[#allocation2 + $0x8] sm:$0xff]
    %v42 = vcvt.f32.s32.to.zero.pseudo %v40
    %v43 = vcvt.f32.s32.to.zero.pseudo %v41
    %v44 = vcvt.s32.f32 %v42
    %v45 = vcvt.s32.f32 %v43
    %v46 = vld [vmem:[#allocation5] sm:$0xff]
    %v47 = vld [vmem:[#allocation5 + $0x8] sm:$0xff]
    %v48 = vcvt.f32.s32.to.zero.pseudo %v46
    %v49 = vcvt.f32.s32.to.zero.pseudo %v47
    %v50 = vcvt.s32.f32 %v48
    %v51 = vcvt.s32.f32 %v49
    %v52 = vmul.f32 %v44, %v50
    %v53 = vmul.f32 %v45, %v51
    %54 = vadd.xlane.f32.xlu0 %v52
    %v55 = vpop.xlane.xlu0 %54
    %56 = vadd.xlane.f32.xlu0 %v53
    %v57 = vpop.xlane.xlu0 %56
    %v60 = vlaneseq
    %v61 = vand.u32 %v60, 127
    %v62 = vlaneseq
    %v63 = vshrl.u32 %v62, 7
    %v64 = vsub.s32 %v61, %v63
    %v65 = vrot.slane %v55, %v64
    %v66 = vlaneseq
    %v67 = vshrl.u32 %v66, 7
    %v68 = vsub.s32 %v61, %v67
    %v69 = vrot.slane %v57, %v68
    %vm70 = vcmask 1041409
    %v71 = vsel %vm70, %v69, %v65
    %vm73 = vcmask 58368
    %v74 = vsel %vm73, %v71, 0.0
    %75 = vadd.xlane.f32.xlu0 %v74
    %v76 = vpop.xlane.xlu0 %75
    %v77 = vadd.f32 %v44, %v50
    %v78 = vadd.f32 %v45, %v51
    %79 = vadd.xlane.f32.xlu0 %v77
    %v80 = vpop.xlane.xlu0 %79
    %81 = vadd.xlane.f32.xlu0 %v78
    %v82 = vpop.xlane.xlu0 %81
    %v85 = vlaneseq
    %v86 = vshrl.u32 %v85, 7
    %v87 = vsub.s32 %v61, %v86
    %v88 = vrot.slane %v80, %v87
    %v89 = vlaneseq
    %v90 = vshrl.u32 %v89, 7
    %v91 = vsub.s32 %v61, %v90
    %v92 = vrot.slane %v82, %v91
    %v93 = vsel %vm70, %v92, %v88
    %v95 = vsel %vm73, %v93, 0.0
    %96 = vadd.xlane.f32.xlu0 %v95
    %v97 = vpop.xlane.xlu0 %96
    %v98 = vmul.f32 %v76, 2.0
    %v99 = vrcp.pop %v97
    %v100 = vmul.f32 %v98, %v99
    %v101 = vsub.f32 1.0, %v100
    %v103 = vlaneseq
    %v104 = vshrl.u32 %v103, 7
    %v105 = vsub.s32 0, %v104
    %v106 = vrot.slane %v101, %v105
    %v107 = vlaneseq
    %v108 = vshrl.u32 %v107, 7
    %v109 = vsub.s32 1, %v108
    %v110 = vrot.slane %v101, %v109
    %113 = vst [vmem:[#allocation7] sm:$0x1] %v106
    %114 = vst [vmem:[#allocation7 + $0x1] sm:$0x1] %v110
    // Predicated region
    $region18: #{tpu_custom_call.1} parent=1 // pred_check
      _
    $region19: #{tpu_custom_call.1} parent=1 // pred_check_branch
      %116 = sbr.rel (0) target = $region21
    $region20: #{tpu_custom_call.1} parent=1 // pred_region
      %s118 = ssub.s32 32, 32
      %119 = vsyncadd [#allocation4], %s118
      %s120 = sshll.u32 [#allocation7], 4
      %s121 = int_to_ptr.vmem [resolvable:$true] %s120
      %126 = dma.vmem_to_hbm [thread:$0]  %s121, 32, %s2, [#allocation4], 16, 16, 1
    $region21: #{tpu_custom_call.1} parent=1 // pred_fallthru
      _
    // Predicated region
    $region22: #{tpu_custom_call.1} parent=1 // pred_check
      _
    $region23: #{tpu_custom_call.1} parent=1 // pred_check_branch
      %128 = sbr.rel (0) target = $region25
    $region24: #{tpu_custom_call.1} parent=1 // pred_region
      %129 = dma.done [#allocation4], 32
    $region25: #{tpu_custom_call.1} parent=1 // pred_fallthru
      _
    %130 = vsyncpa [#allocation3], 1
    %131 = vsyncpa [#allocation6], 1
    %132 = vsyncpa [#allocation4], 1

</llo_original>
